<compile_context>
chip_gen: v6e
topology: v6e:2x2x1
jax: 0.10.0
libtpu: 0.0.40
codegen_flags: <defaults>
</compile_context>

<pallas_src>
import numpy as np
import jax
import jax.numpy as jnp
from jax import lax
from jax.experimental import pallas as pl
from jax.experimental.pallas import tpu as pltpu


def _round_up(x, m):
    return (x + m - 1) // m * m


# ----------------------------------------------------------------------------
# Pallas kernel
# ----------------------------------------------------------------------------
def _mean_vfe_kernel(x_ref, sel_ref, npts_ref, o_ref):
    # x_ref   : (TILE, M*C)          streamed point rows, native dtype, lane-dense
    # sel_ref : (F, M*C)             resident 0/1 channel-selection matrix
    # npts_ref: (1, TILE)            number of real points per voxel (f32)
    # o_ref   : (F, TILE)            lane-dense output block
    s = lax.dot_general(
        sel_ref[...], x_ref[...],
        dimension_numbers=(((1,), (1,)), ((), ())),   # contract the M*C axis (B-transposed)
        preferred_element_type=jnp.float32)           # f32 accumulation on the MXU
    # Exact divide (HBM-bound kernel -> exactness is free).  num_points == 0 would give inf,
    # matching PyTorch's unclamped divide; hard voxelization guarantees >= 1 point.
    o_ref[...] = (s / npts_ref[...]).astype(o_ref.dtype)


def hard_simple_vfe_forward(features, num_points, coors=None, *, num_features=4, tile=4096):
    """Mean of the first `num_features` channels of the points inside each voxel."""
    del coors  # unused by the PyTorch forward as well (API parity only)
    n, m, c_in = features.shape
    assert num_features <= c_in

    feat_dtype = features.dtype
    if not jnp.issubdtype(feat_dtype, jnp.floating):
        features = features.astype(jnp.float32)
        feat_dtype = features.dtype

    # Flatten (M, C) -> one lane-dense last axis; contiguous row-major reshape (no copy).
    # No dtype cast here: the kernel streams the native dtype (halves traffic for bf16 inputs).
    x = features.reshape(n, m * c_in)
    npts = num_points.astype(jnp.float32).reshape(1, n)   # (1, N): lane-dense, tiny

    # 0/1 selection matrix: out[co, :] = sum_m x[:, m*c_in + co]; drops channels >= num_features.
    lane_ch = jnp.arange(m * c_in, dtype=jnp.int32) % c_in
    sel = (jnp.arange(num_features, dtype=jnp.int32)[:, None]
           == lane_ch[None, :]).astype(feat_dtype)        # (F, M*C), exact in bf16/f32

    # Tile the voxel axis: large tiles for roofline, but keep >= ~4 grid steps so both v7x
    # TensorCores stay busy and the pipeline double-buffers; multiple of 128 so the tile
    # axis can also serve as a full-lane dim for npts / output blocks.
    req = _round_up(max(128, int(tile)), 128)
    cap = _round_up(max(1, -(-n // 4)), 128)
    tile = min(req, cap)
    grid = pl.cdiv(n, tile)          # trailing partial block: no HBM pad pass needed

    itemsize = np.dtype(feat_dtype).itemsize
    cost = pl.CostEstimate(
        flops=2 * n * m * c_in * num_features,
        transcendentals=0,
        bytes_accessed=n * m * c_in * itemsize + n * 4 + n * num_features * itemsize,
    )

    out_t = pl.pallas_call(
        _mean_vfe_kernel,
        out_shape=jax.ShapeDtypeStruct((num_features, n), feat_dtype),
        grid=(grid,),
        in_specs=[
            pl.BlockSpec((tile, m * c_in), lambda i: (i, 0)),            # streamed point rows
            pl.BlockSpec((num_features, m * c_in), lambda i: (0, 0)),    # resident selection matrix
            pl.BlockSpec((1, tile), lambda i: (0, i)),                   # per-voxel point counts
        ],
        out_specs=pl.BlockSpec((num_features, tile), lambda i: (0, i)),  # lane-dense output
        compiler_params=pltpu.CompilerParams(
            dimension_semantics=("parallel",),   # shard voxel tiles across TensorCores (v7x)
        ),
        cost_estimate=cost,
    )(x, sel, npts)

    # Tiny (F, N) -> (N, F) transpose in the wrapper (negligible vs. the N*M*C input read).
    return out_t.T


# ----------------------------------------------------------------------------
# Pure-JAX reference (for correctness check)
# ----------------------------------------------------------------------------
def reference_forward(features, num_points, num_features=4):
    s = jnp.sum(features[:, :, :num_features].astype(jnp.float32), axis=1)
    return s / num_points.astype(jnp.float32)[:, None]


# ----------------------------------------------------------------------------
# Example / main
# ----------------------------------------------------------------------------
if __name__ == "__main__":
    key = jax.random.PRNGKey(0)
    # N deliberately NOT a multiple of the tile: exercises the pad-free partial-block path.
    n_voxels, max_points, c_in = 1000, 32, 4
    num_features = 4
    kf, kn = jax.random.split(key)

    # Number of valid points per voxel (hard voxelization always has >= 1).
    num_points = jax.random.randint(kn, (n_voxels,), 1, max_points + 1, dtype=jnp.int32)

    # Point features, zero-padded beyond each voxel's valid point count.
    raw = jax.random.uniform(kf, (n_voxels, max_points, c_in), jnp.float32,
                             minval=-1.0, maxval=1.0)
    valid = (jnp.arange(max_points)[None, :] < num_points[:, None])[..., None]
    features = jnp.where(valid, raw, 0.0)

    coors = jnp.zeros((n_voxels, 4), jnp.int32)   # unused by the forward (API parity only)

    out = hard_simple_vfe_forward(features, num_points, coors, num_features=num_features)
    out = jax.block_until_ready(out)

    ref = jax.block_until_ready(reference_forward(features, num_points, num_features))

    assert out.shape == (n_voxels, num_features)
    np.testing.assert_allclose(np.asarray(out), np.asarray(ref), rtol=1e-3, atol=1e-3)
    print("KERNEL_OK")
</pallas_src>

<mosaic_0001>
module attributes {stable_mosaic.version = 11 : i64} {
  func.func @_mean_vfe_kernel(%arg0: i32, %arg1: memref<256x128xf32, #tpu.memory_space<vmem>>, %arg2: memref<4x128xf32, #tpu.memory_space<vmem>>, %arg3: memref<1x256xf32, #tpu.memory_space<vmem>>, %arg4: memref<4x256xf32, #tpu.memory_space<vmem>>) attributes {dimension_semantics = [#tpu.dimension_semantics<parallel>], iteration_bounds = array<i64: 4>, scalar_prefetch = 0 : i64, scratch_operands = 0 : i64, tpu.core_type = #tpu.core_type<tc>, window_params = [{transform_indices = @transform_0, window_bounds = array<i64: 256, 128>}, {pipeline_mode = #tpu.pipeline_mode<synchronous>, transform_indices = @transform_1, window_bounds = array<i64: 4, 128>}, {transform_indices = @transform_2, window_bounds = array<i64: 1, 256>}, {transform_indices = @transform_3, window_bounds = array<i64: 4, 256>}]} {
    %c0 = arith.constant 0 : index
    %c0_0 = arith.constant 0 : index
    %0 = vector.load %arg2[%c0, %c0_0] : memref<4x128xf32, #tpu.memory_space<vmem>>, vector<4x128xf32>
    %c0_1 = arith.constant 0 : index
    %c0_2 = arith.constant 0 : index
    %1 = vector.load %arg1[%c0_1, %c0_2] : memref<256x128xf32, #tpu.memory_space<vmem>>, vector<256x128xf32>
    %cst = arith.constant dense<0.000000e+00> : vector<4x256xf32>
    %2 = tpu.matmul %0, %1, %cst {dimension_numbers = #tpu.dot_dimension_numbers<[1], [1], [0], [0], [0, 0, 1, 0], [], []>} : vector<4x128xf32>, vector<256x128xf32>, vector<4x256xf32> -> vector<4x256xf32>
    %c0_3 = arith.constant 0 : index
    %c0_4 = arith.constant 0 : index
    %3 = vector.load %arg3[%c0_3, %c0_4] : memref<1x256xf32, #tpu.memory_space<vmem>>, vector<1x256xf32>
    %4 = vector.broadcast %3 : vector<1x256xf32> to vector<4x256xf32>
    %5 = arith.divf %2, %4 : vector<4x256xf32>
    %c0_5 = arith.constant 0 : index
    %c0_6 = arith.constant 0 : index
    %6 = vector.load %arg4[%c0_5, %c0_6] : memref<4x256xf32, #tpu.memory_space<vmem>>, vector<4x256xf32>
    tpu.vector_store %arg4[%c0_5, %c0_6], %5 {strides = array<i32>} : memref<4x256xf32, #tpu.memory_space<vmem>>, vector<4x256xf32>,
    return
  }
  func.func @transform_0(%arg0: i32) -> (i32, i32) {
    %c0_i32 = arith.constant 0 : i32
    %c0_i32_0 = arith.constant 0 : i32
    return %arg0, %c0_i32 : i32, i32
  }
  func.func @transform_1(%arg0: i32) -> (i32, i32) {
    %c0_i32 = arith.constant 0 : i32
    %c0_i32_0 = arith.constant 0 : i32
    %c0_i32_1 = arith.constant 0 : i32
    return %c0_i32, %c0_i32_0 : i32, i32
  }
  func.func @transform_2(%arg0: i32) -> (i32, i32) {
    %c0_i32 = arith.constant 0 : i32
    %c0_i32_0 = arith.constant 0 : i32
    return %c0_i32, %arg0 : i32, i32
  }
  func.func @transform_3(%arg0: i32) -> (i32, i32) {
    %c0_i32 = arith.constant 0 : i32
    %c0_i32_0 = arith.constant 0 : i32
    return %c0_i32, %arg0 : i32, i32
  }
}

</mosaic_0001>

<llo_original>
// kernel: tpu_custom_call.1
$region0: #{tpu_custom_call.1}
  #allocation0 [shape = 'u32[]', space=smem, size = 0x4, offset = 0x4, fixed_abs, tag = 'smem constant byte address 0x4 - core index']
  #allocation1 [shape = 'u32[144,128]{1,0:T(1,128)}', space=vmem, size = 0x12000, scoped, tag = 'internal scratch']
  %s0 = inlined_call_operand.hbm [shape: f32[1000,128], index: 0, kind: input, shape index: {}]
  %s1 = inlined_call_operand.hbm [shape: f32[4,128], index: 1, kind: input, shape index: {}]
  %s2 = inlined_call_operand.hbm [shape: f32[1,1000], index: 2, kind: input, shape index: {}]
  %s3 = inlined_call_operand.hbm [shape: f32[4,1000], index: 3, kind: output, shape index: {}]
  %s4 = sld [smem:[#allocation0]]
  $region57: #{tpu_custom_call.1} parent=0
    _
  %s6 = ssub.s32 1, %s4
  %s7 = scalar_select 0, %s6, %s4
  $region1: #{tpu_custom_call.1} parent=0
    #allocation2 [shape = 'u8[262144]{0}', space=vmem, size = 0x40000, scoped, tag = 'input window, operand 0']
    #allocation3 [shape = 's32[2]{0}', space=sflag, size = 0x8, scoped, tag = 'scoped memory for tpu_custom_call.1']
    #allocation4 [shape = 's32[2]{0}', space=sflag, size = 0x8, scoped, tag = 'scoped memory for tpu_custom_call.1']
    #allocation5 [shape = 'u8[2048]{0}', space=vmem, size = 0x800, scoped, tag = 'input window, operand 1, single buffered']
    #allocation6 [shape = 's32[1]{0}', space=sflag, size = 0x4, scoped, tag = 'scoped memory for tpu_custom_call.1']
    #allocation7 [shape = 'u8[2048]{0}', space=vmem, size = 0x800, scoped, tag = 'input window, operand 2']
    #allocation8 [shape = 'u8[8192]{0}', space=vmem, size = 0x2000, scoped, tag = 'output window, operand 0']
    %8 = vsyncpa [#allocation3], 0
    %s9 = scalar_lea.sflag [#allocation3], 1
    %10 = vsyncpa %s9, 0
    %11 = vsyncpa [#allocation6], 0
    %12 = vsyncpa [#allocation4], 0
    %s13 = scalar_lea.sflag [#allocation4], 1
    %14 = vsyncpa %s13, 0
    loop: start=0, step=1, limit=6
    $region2: #{tpu_custom_call.1} parent=1 // loop_pre_header
      _
    $region3: #{tpu_custom_call.1} parent=1 // loop_header
      %s16 = sphi 0, %s20
      %p17 = scmp.ge.s32.totalorder %s16, 6
      %s26 = sphi 0, %s28
      %s29 = sphi 0, %s26
      %s30 = sphi 0, %s29
      %s46 = sphi 0, %s30
      %s50 = sphi 0, %s50
      %s52 = sphi 0, %s50
      %s53 = sphi 0, %s52
      %s67 = sphi 0, %s53
      %s73 = sphi 0, %s75
      %s76 = sphi 0, %s73
      %s77 = sphi 0, %s76
      %s93 = sphi 0, %s77
      %s99 = sphi 0, %s101
      %s102 = sphi 0, %s99
      %s103 = sphi 0, %s102
      %s119 = sphi 0, %s103
    $region4: #{tpu_custom_call.1} parent=1 // loop_header_branch
      %19 = sbr.rel (%p17) target = $region8
    $region5: #{tpu_custom_call.1} parent=1 // loop_body
      %s21 = ssub.s32 %s16, 1
      %s22 = ssub.s32 %s16, 2
      %s23 = sadd.s32 %s16, 1
      %s24 = ssub.s32 %s16, %s23
      %p25 = scmp.eq.s32.totalorder %s24, 0
      %s27 = sadd.s32 %s26, 1
      %s28 = scalar_select %p25, %s26, %s27
      %p31 = pneg %p25
      %p32 = scmp.eq.s32.totalorder %s16, 3
      %p33 = por %p31, %p32
      %p34 = scmp.ne.s32.totalorder %s26, %s29
      %p35 = scmp.eq.s32.totalorder %s16, 0
      %p36 = por %p34, %p35
      %p37 = scmp.ne.s32.totalorder %s26, %s29
      %p38 = scmp.eq.s32.totalorder %s21, 3
      %p39 = por %p37, %p38
      %p40 = scmp.ne.s32.totalorder %s29, %s30
      %p41 = scmp.eq.s32.totalorder %s21, 0
      %p42 = por %p40, %p41
      %p43 = scmp.ne.s32.totalorder %s29, %s30
      %p44 = scmp.eq.s32.totalorder %s22, 3
      %p45 = por %p43, %p44
      %p47 = scmp.ne.s32.totalorder %s30, %s46
      %p48 = scmp.eq.s32.totalorder %s22, 0
      %p49 = por %p47, %p48
      %s51 = sadd.s32 %s50, 1
      %p54 = scmp.eq.s32.totalorder %s16, 3
      %p55 = scmp.ne.s32.totalorder %s50, %s52
      %p56 = scmp.eq.s32.totalorder %s16, 0
      %p57 = por %p55, %p56
      %p58 = scmp.ne.s32.totalorder %s50, %s52
      %p59 = scmp.eq.s32.totalorder %s21, 3
      %p60 = por %p58, %p59
      %p61 = scmp.ne.s32.totalorder %s52, %s53
      %p62 = scmp.eq.s32.totalorder %s21, 0
      %p63 = por %p61, %p62
      %p64 = scmp.ne.s32.totalorder %s52, %s53
      %p65 = scmp.eq.s32.totalorder %s22, 3
      %p66 = por %p64, %p65
      %p68 = scmp.ne.s32.totalorder %s53, %s67
      %p69 = scmp.eq.s32.totalorder %s22, 0
      %p70 = por %p68, %p69
      %s71 = ssub.s32 %s16, %s23
      %p72 = scmp.eq.s32.totalorder %s71, 0
      %s74 = sadd.s32 %s73, 1
      %s75 = scalar_select %p72, %s73, %s74
      %p78 = pneg %p72
      %p79 = scmp.eq.s32.totalorder %s16, 3
      %p80 = por %p78, %p79
      %p81 = scmp.ne.s32.totalorder %s73, %s76
      %p82 = scmp.eq.s32.totalorder %s16, 0
      %p83 = por %p81, %p82
      %p84 = scmp.ne.s32.totalorder %s73, %s76
      %p85 = scmp.eq.s32.totalorder %s21, 3
      %p86 = por %p84, %p85
      %p87 = scmp.ne.s32.totalorder %s76, %s77
      %p88 = scmp.eq.s32.totalorder %s21, 0
      %p89 = por %p87, %p88
      %p90 = scmp.ne.s32.totalorder %s76, %s77
      %p91 = scmp.eq.s32.totalorder %s22, 3
      %p92 = por %p90, %p91
      %p94 = scmp.ne.s32.totalorder %s77, %s93
      %p95 = scmp.eq.s32.totalorder %s22, 0
      %p96 = por %p94, %p95
      %s97 = ssub.s32 %s16, %s23
      %p98 = scmp.eq.s32.totalorder %s97, 0
      %s100 = sadd.s32 %s99, 1
      %s101 = scalar_select %p98, %s99, %s100
      %p104 = pneg %p98
      %p105 = scmp.eq.s32.totalorder %s16, 3
      %p106 = por %p104, %p105
      %p107 = scmp.ne.s32.totalorder %s99, %s102
      %p108 = scmp.eq.s32.totalorder %s16, 0
      %p109 = por %p107, %p108
      %p110 = scmp.ne.s32.totalorder %s99, %s102
      %p111 = scmp.eq.s32.totalorder %s21, 3
      %p112 = por %p110, %p111
      %p113 = scmp.ne.s32.totalorder %s102, %s103
      %p114 = scmp.eq.s32.totalorder %s21, 0
      %p115 = por %p113, %p114
      %p116 = scmp.ne.s32.totalorder %s102, %s103
      %p117 = scmp.eq.s32.totalorder %s22, 3
      %p118 = por %p116, %p117
      %p120 = scmp.ne.s32.totalorder %s103, %s119
      %p121 = scmp.eq.s32.totalorder %s22, 0
      %p122 = por %p120, %p121
      %p123 = scmp.le.s32.totalorder 1, %s16
      %p124 = scmp.lt.s32.totalorder %s16, 5
      %p125 = pnand %p123, %p124
      %p126 = pneg %p125
      // Predicated region
      $region9: #{tpu_custom_call.1} parent=5 // pred_check
        _
      $region10: #{tpu_custom_call.1} parent=5 // pred_check_branch
        %128 = sbr.rel (%p125) target = $region12
      $region11: #{tpu_custom_call.1} parent=5 // pred_region
        %s129 = ssub.s32 %s16, 1
        // Predicated region
        $region13: #{tpu_custom_call.1} parent=11 // pred_check
          %p130 = pneg %p63
        $region14: #{tpu_custom_call.1} parent=11 // pred_check_branch
          %132 = sbr.rel (%p130) target = $region16
        $region15: #{tpu_custom_call.1} parent=11 // pred_region
          %s134 = ssub.s32 64, 64
          %135 = vsyncadd [#allocation6], %s134
          %s137 = sshll.u32 [#allocation5], 4
          %s138 = int_to_ptr.vmem [resolvable:$true] %s137
          %140 = dma.hbm_to_vmem [thread:$0]  %s1, 64, %s138, [#allocation6]
        $region16: #{tpu_custom_call.1} parent=11 // pred_fallthru
          _
      $region12: #{tpu_custom_call.1} parent=5 // pred_fallthru
        _
      %p141 = scmp.lt.s32.totalorder %s16, 4
      // Predicated region
      $region17: #{tpu_custom_call.1} parent=5 // pred_check
        %p142 = pneg %p141
      $region18: #{tpu_custom_call.1} parent=5 // pred_check_branch
        %144 = sbr.rel (%p142) target = $region20
      $region19: #{tpu_custom_call.1} parent=5 // pred_region
        // Predicated region
        $region21: #{tpu_custom_call.1} parent=19 // pred_check
          %p145 = pneg %p36
        $region22: #{tpu_custom_call.1} parent=19 // pred_check_branch
          %147 = sbr.rel (%p145) target = $region24
        $region23: #{tpu_custom_call.1} parent=19 // pred_region
          %s148 = sand.u32 %s16, 1
          %s149 = scalar_lea.sflag [#allocation3], %s148
          %s150 = sand.u32 %s26, 1
          %s151 = smul.addr %s150, 256
          %s152 = scalar_lea.vmem [#allocation2], %s151
          %s153 = smul.u32 32, %s16
          %s154 = ssub.s32 125, %s153
          %p155 = scmp.lt.s32.totalorder %s154, 32
          %s156 = scalar_select %p155, %s154, 32
          %s157 = smul.u32 128, %s156
          %s159 = ssub.s32 4096, %s157
          %160 = vsyncadd %s149, %s159
          %p161 = scmp.ne.s32.totalorder 0, %s157
          %s162 = smul.addr %s153, 128
          %s163 = scalar_lea.hbm %s0, %s162
          %s164 = smul.u32 8, %s156
          %s165 = sshll.u32 %s152, 4
          %s166 = int_to_ptr.vmem [resolvable:$true] %s165
          %s167 = sshll.u32 %s164, 4
          %171 = dma.hbm_to_vmem [thread:$0]  (%p161), %s163, %s167, %s166, %s149, 128, 128, 8
        $region24: #{tpu_custom_call.1} parent=19 // pred_fallthru
          _
        // Predicated region
        $region25: #{tpu_custom_call.1} parent=19 // pred_check
          %p172 = pneg %p83
        $region26: #{tpu_custom_call.1} parent=19 // pred_check_branch
          %174 = sbr.rel (%p172) target = $region28
        $region27: #{tpu_custom_call.1} parent=19 // pred_region
          %s175 = sand.u32 %s16, 1
          %s176 = scalar_lea.sflag [#allocation3], %s175
          %s177 = sand.u32 %s73, 1
          %s178 = smul.addr %s177, 2
          %s179 = scalar_lea.vmem [#allocation7], %s178
          %s180 = smul.u32 2, %s16
          %s182 = ssub.s32 32, 32
          %183 = vsyncadd %s176, %s182
          %s184 = smul.addr %s180, 16
          %s185 = scalar_lea.hbm %s2, %s184
          %s187 = sshll.u32 %s179, 4
          %s188 = int_to_ptr.vmem [resolvable:$true] %s187
          %190 = dma.hbm_to_vmem [thread:$0]  %s185, 32, %s188, %s176
        $region28: #{tpu_custom_call.1} parent=19 // pred_fallthru
          _
      $region20: #{tpu_custom_call.1} parent=5 // pred_fallthru
        _
      %p191 = scmp.le.s32.totalorder 1, %s16
      %p192 = scmp.lt.s32.totalorder %s16, 5
      %p193 = pnand %p191, %p192
      %p194 = pneg %p193
      // Predicated region
      $region29: #{tpu_custom_call.1} parent=5 // pred_check
        _
      $region30: #{tpu_custom_call.1} parent=5 // pred_check_branch
        %196 = sbr.rel (%p193) target = $region32
      $region31: #{tpu_custom_call.1} parent=5 // pred_region
        %s197 = ssub.s32 %s16, 1
        %s198 = sand.u32 %s21, 1
        %s199 = scalar_lea.sflag [#allocation3], %s198
        %s200 = sand.u32 %s29, 1
        %s201 = smul.addr %s200, 256
        %s202 = scalar_lea.vmem [#allocation2], %s201
        // Predicated region
        $region33: #{tpu_custom_call.1} parent=31 // pred_check
          %p203 = pneg %p42
        $region34: #{tpu_custom_call.1} parent=31 // pred_check_branch
          %205 = sbr.rel (%p203) target = $region36
        $region35: #{tpu_custom_call.1} parent=31 // pred_region
          %206 = dma.done %s199, 4096
        $region36: #{tpu_custom_call.1} parent=31 // pred_fallthru
          _
        // Predicated region
        $region37: #{tpu_custom_call.1} parent=31 // pred_check
          %p207 = pneg %p63
        $region38: #{tpu_custom_call.1} parent=31 // pred_check_branch
          %209 = sbr.rel (%p207) target = $region40
        $region39: #{tpu_custom_call.1} parent=31 // pred_region
          %210 = dma.done [#allocation6], 64
        $region40: #{tpu_custom_call.1} parent=31 // pred_fallthru
          _
        %s211 = sand.u32 %s21, 1
        %s212 = scalar_lea.sflag [#allocation3], %s211
        %s213 = sand.u32 %s76, 1
        %s214 = smul.addr %s213, 2
        %s215 = scalar_lea.vmem [#allocation7], %s214
        // Predicated region
        $region41: #{tpu_custom_call.1} parent=31 // pred_check
          %p216 = pneg %p89
        $region42: #{tpu_custom_call.1} parent=31 // pred_check_branch
          %218 = sbr.rel (%p216) target = $region44
        $region43: #{tpu_custom_call.1} parent=31 // pred_region
          %219 = dma.done %s212, 32
        $region44: #{tpu_custom_call.1} parent=31 // pred_fallthru
          _
        %s220 = sand.u32 %s21, 1
        %s221 = scalar_lea.sflag [#allocation3], %s220
        %s222 = sand.u32 %s29, 1
        %s223 = smul.addr %s222, 256
        %s224 = scalar_lea.vmem [#allocation2], %s223
        %p225 = pneg %p42
        %p226 = pneg %p39
        %p227 = pneg %p63
        %p228 = pneg %p60
        %s229 = sand.u32 %s21, 1
        %s230 = scalar_lea.sflag [#allocation3], %s229
        %s231 = sand.u32 %s76, 1
        %s232 = smul.addr %s231, 2
        %s233 = scalar_lea.vmem [#allocation7], %s232
        %p234 = pneg %p89
        %p235 = pneg %p86
        %p236 = pneg %p115
        %p237 = pneg %p112
        %s238 = sand.u32 %s102, 1
        %s239 = scalar_lea.sflag [#allocation4], %s238
        %s240 = sand.u32 %s102, 1
        %s241 = smul.addr %s240, 8
        %s242 = scalar_lea.vmem [#allocation8], %s241
        %s243 = smul.u32 32, %s21
        %s244 = ssub.s32 125, %s243
        %p245 = scmp.lt.s32.totalorder %s244, 32
        %s246 = scalar_select %p245, %s244, 32
        %s247 = smul.u32 128, %s246
        %s248 = smul.u32 2, %s21
        %s249 = smul.u32 2, %s21
        %v250 = vld [vmem:[#allocation5] sm:$0xf]
        %v251 = vld [vmem:[%s202] sm:$0xff]
        %v252 = vld [vmem:[%s202 + $0x8] sm:$0xff]
        %v253 = vld [vmem:[%s202 + $0x10] sm:$0xff]
        %v254 = vld [vmem:[%s202 + $0x18] sm:$0xff]
        %v255 = vld [vmem:[%s202 + $0x20] sm:$0xff]
        %v256 = vld [vmem:[%s202 + $0x28] sm:$0xff]
        %v257 = vld [vmem:[%s202 + $0x30] sm:$0xff]
        %v258 = vld [vmem:[%s202 + $0x38] sm:$0xff]
        %v259 = vld [vmem:[%s202 + $0x40] sm:$0xff]
        %v260 = vld [vmem:[%s202 + $0x48] sm:$0xff]
        %v261 = vld [vmem:[%s202 + $0x50] sm:$0xff]
        %v262 = vld [vmem:[%s202 + $0x58] sm:$0xff]
        %v263 = vld [vmem:[%s202 + $0x60] sm:$0xff]
        %v264 = vld [vmem:[%s202 + $0x68] sm:$0xff]
        %v265 = vld [vmem:[%s202 + $0x70] sm:$0xff]
        %v266 = vld [vmem:[%s202 + $0x78] sm:$0xff]
        %v267 = vld [vmem:[%s202 + $0x80] sm:$0xff]
        %v268 = vld [vmem:[%s202 + $0x88] sm:$0xff]
        %v269 = vld [vmem:[%s202 + $0x90] sm:$0xff]
        %v270 = vld [vmem:[%s202 + $0x98] sm:$0xff]
        %v271 = vld [vmem:[%s202 + $0xa0] sm:$0xff]
        %v272 = vld [vmem:[%s202 + $0xa8] sm:$0xff]
        %v273 = vld [vmem:[%s202 + $0xb0] sm:$0xff]
        %v274 = vld [vmem:[%s202 + $0xb8] sm:$0xff]
        %v275 = vld [vmem:[%s202 + $0xc0] sm:$0xff]
        %v276 = vld [vmem:[%s202 + $0xc8] sm:$0xff]
        %v277 = vld [vmem:[%s202 + $0xd0] sm:$0xff]
        %v278 = vld [vmem:[%s202 + $0xd8] sm:$0xff]
        %v279 = vld [vmem:[%s202 + $0xe0] sm:$0xff]
        %v280 = vld [vmem:[%s202 + $0xe8] sm:$0xff]
        %v281 = vld [vmem:[%s202 + $0xf0] sm:$0xff]
        %v282 = vld [vmem:[%s202 + $0xf8] sm:$0xff]
        %283 = vmatprep.subr.mxu0 0.0
        %284 = vmatpush1.xpose.msra.mxu0 %v266
        %285 = vmatprep.subr.mxu0 0.0
        %286 = vmatpush1.xpose.msra.mxu0 %v265
        %287 = vmatprep.subr.mxu0 0.0
        %288 = vmatpush1.xpose.msra.mxu0 %v264
        %289 = vmatprep.subr.mxu0 0.0
        %290 = vmatpush1.xpose.msra.mxu0 %v263
        %291 = vmatprep.subr.mxu0 0.0
        %292 = vmatpush1.xpose.msra.mxu0 %v262
        %293 = vmatprep.subr.mxu0 0.0
        %294 = vmatpush1.xpose.msra.mxu0 %v261
        %295 = vmatprep.subr.mxu0 0.0
        %296 = vmatpush1.xpose.msra.mxu0 %v260
        %297 = vmatprep.subr.mxu0 0.0
        %298 = vmatpush1.xpose.msra.mxu0 %v259
        %299 = vmatprep.subr.mxu0 0.0
        %300 = vmatpush1.xpose.msra.mxu0 %v258
        %301 = vmatprep.subr.mxu0 0.0
        %302 = vmatpush1.xpose.msra.mxu0 %v257
        %303 = vmatprep.subr.mxu0 0.0
        %304 = vmatpush1.xpose.msra.mxu0 %v256
        %305 = vmatprep.subr.mxu0 0.0
        %306 = vmatpush1.xpose.msra.mxu0 %v255
        %307 = vmatprep.subr.mxu0 0.0
        %308 = vmatpush1.xpose.msra.mxu0 %v254
        %309 = vmatprep.subr.mxu0 0.0
        %310 = vmatpush1.xpose.msra.mxu0 %v253
        %311 = vmatprep.subr.mxu0 0.0
        %312 = vmatpush1.xpose.msra.mxu0 %v252
        %313 = vmatprep.subr.mxu0 0.0
        %314 = vmatpush1.xpose.msra.mxu0 %v251
        %315 = vmatprep.subr.mxu0 0.0
        %316 = vmatpush2.xpose.msra.mxu0 %v282
        %317 = vmatprep.subr.mxu0 0.0
        %318 = vmatpush2.xpose.msra.mxu0 %v281
        %319 = vmatprep.subr.mxu0 0.0
        %320 = vmatpush2.xpose.msra.mxu0 %v280
        %321 = vmatprep.subr.mxu0 0.0
        %322 = vmatpush2.xpose.msra.mxu0 %v279
        %323 = vmatprep.subr.mxu0 0.0
        %324 = vmatpush2.xpose.msra.mxu0 %v278
        %325 = vmatprep.subr.mxu0 0.0
        %326 = vmatpush2.xpose.msra.mxu0 %v277
        %327 = vmatprep.subr.mxu0 0.0
        %328 = vmatpush2.xpose.msra.mxu0 %v276
        %329 = vmatprep.subr.mxu0 0.0
        %330 = vmatpush2.xpose.msra.mxu0 %v275
        %331 = vmatprep.subr.mxu0 0.0
        %332 = vmatpush2.xpose.msra.mxu0 %v274
        %333 = vmatprep.subr.mxu0 0.0
        %334 = vmatpush2.xpose.msra.mxu0 %v273
        %335 = vmatprep.subr.mxu0 0.0
        %336 = vmatpush2.xpose.msra.mxu0 %v272
        %337 = vmatprep.subr.mxu0 0.0
        %338 = vmatpush2.xpose.msra.mxu0 %v271
        %339 = vmatprep.subr.mxu0 0.0
        %340 = vmatpush2.xpose.msra.mxu0 %v270
        %341 = vmatprep.subr.mxu0 0.0
        %342 = vmatpush2.xpose.msra.mxu0 %v269
        %343 = vmatprep.subr.mxu0 0.0
        %344 = vmatpush2.xpose.msra.mxu0 %v268
        %345 = vmatprep.subr.mxu0 0.0
        %346 = vmatpush2.xpose.msra.mxu0 %v267
        %347 = vmatprep.mubr.f32.mxu0 0.0
        %348 = vmatmul.mubr.f32.gmra.mxu0 %v250
        %v349 = vpop.f32.mrf.mxu0
        %v350 = vadd.f32 0.0, %v349
        %v351 = vpop.f32.mrf.mxu0
        %v352 = vadd.f32 0.0, %v351
        %353 = vdwg.mxu0
        %v354 = vld [vmem:[%s215] sm:$0x3]
        %v356 = vlaneseq
        %v357 = vshrl.u32 %v356, 7
        %v358 = vsub.s32 0, %v357
        %v359 = vrot.slane %v354, %v358
        %v360 = vlaneseq
        %v361 = vshrl.u32 %v360, 7
        %v362 = vsub.s32 1, %v361
        %v363 = vrot.slane %v354, %v362
        %v366 = vrcp.pop %v359
        %v367 = vmul.f32 %v350, %v366
        %v368 = vrcp.pop %v363
        %v369 = vmul.f32 %v352, %v368
        %v372 = vcombine.low %v367, %v369
        %374 = vst [vmem:[%s242] sm:$0xff] %v372
        %s375 = sand.u32 %s102, 1
        %s376 = scalar_lea.sflag [#allocation4], %s375
        %s377 = sand.u32 %s102, 1
        %s378 = smul.addr %s377, 8
        %s379 = scalar_lea.vmem [#allocation8], %s378
        // Predicated region
        $region45: #{tpu_custom_call.1} parent=31 // pred_check
          %p380 = pneg %p112
        $region46: #{tpu_custom_call.1} parent=31 // pred_check_branch
          %382 = sbr.rel (%p380) target = $region48
        $region47: #{tpu_custom_call.1} parent=31 // pred_region
          %s383 = smul.u32 2, %s21
          %s385 = ssub.s32 128, 128
          %386 = vsyncadd %s376, %s385
          %s387 = smul.addr %s383, 64
          %s388 = scalar_lea.hbm %s3, %s387
          %s390 = sshll.u32 %s379, 4
          %s391 = int_to_ptr.vmem [resolvable:$true] %s390
          %393 = dma.vmem_to_hbm [thread:$0]  %s391, 128, %s388, %s376
        $region48: #{tpu_custom_call.1} parent=31 // pred_fallthru
          _
      $region32: #{tpu_custom_call.1} parent=5 // pred_fallthru
        _
      %p394 = scmp.le.s32.totalorder 2, %s16
      // Predicated region
      $region49: #{tpu_custom_call.1} parent=5 // pred_check
        %p395 = pneg %p394
      $region50: #{tpu_custom_call.1} parent=5 // pred_check_branch
        %397 = sbr.rel (%p395) target = $region52
      $region51: #{tpu_custom_call.1} parent=5 // pred_region
        %s398 = ssub.s32 %s16, 2
        // Predicated region
        $region53: #{tpu_custom_call.1} parent=51 // pred_check
          %p399 = pneg %p118
        $region54: #{tpu_custom_call.1} parent=51 // pred_check_branch
          %401 = sbr.rel (%p399) target = $region56
        $region55: #{tpu_custom_call.1} parent=51 // pred_region
          %s402 = sand.u32 %s103, 1
          %s403 = scalar_lea.sflag [#allocation4], %s402
          %s404 = sand.u32 %s103, 1
          %s405 = smul.addr %s404, 8
          %s406 = scalar_lea.vmem [#allocation8], %s405
          %407 = dma.done %s403, 128
        $region56: #{tpu_custom_call.1} parent=51 // pred_fallthru
          _
      $region52: #{tpu_custom_call.1} parent=5 // pred_fallthru
        _
    $region6: #{tpu_custom_call.1} parent=1 // loop_footer
      %s20 = sadd.s32 1, %s16
    $region7: #{tpu_custom_call.1} parent=1 // loop_footer_branch
      %15 = sbr.rel target = $region3
    $region8: #{tpu_custom_call.1} parent=1 // loop_exit
      _
    %408 = vsyncpa [#allocation3], 1
    %s409 = scalar_lea.sflag [#allocation3], 1
    %410 = vsyncpa %s409, 1
    %411 = vsyncpa [#allocation6], 1
    %412 = vsyncpa [#allocation4], 1
    %s413 = scalar_lea.sflag [#allocation4], 1
    %414 = vsyncpa %s413, 1

</llo_original>
